<compile_context>
chip_gen: v7x
topology: tpu7x:2x2x1
jax: 0.10.0
libtpu: 0.0.40
codegen_flags: <defaults>
</compile_context>

<pallas_src>
import functools

import jax
import jax.numpy as jnp
from jax.experimental import pallas as pl
from jax.experimental.pallas import tpu as pltpu

FEATURES = 12
H1 = H2 = H3 = H4 = 100
OUTPUT = 2
LANE = 128          # lane width: hidden/output dims padded to 128
FEAT_PAD = 16       # input-feature dim padded to one bf16 sublane tile


def _round_up(n, m):
    return ((n + m - 1) // m) * m


def _pad2(a, rows, cols):
    return jnp.pad(a, ((0, rows - a.shape[0]), (0, cols - a.shape[1])))


def _choose_tb(B):
    """Batch tile: one grid step for small B, >=2 steps (multiple of 256) for large B."""
    b16 = _round_up(B, 16)
    if b16 <= 256:
        return b16
    half = _round_up((b16 + 1) // 2, 256)
    return max(256, min(1024, half))


def _mlp_kernel(x_ref, w1_ref, ws_ref, bs_ref, o_ref):
    """One (tb, FEAT_PAD) batch tile through all five (padded) layers.

    x_ref:  (tb, 16)        bf16   padded input features
    w1_ref: (16, 128)       bf16   fc1 weight (rows 12.. are zero)
    ws_ref: (4, 128, 128)   bf16   fc2/fc3/fc4/out weights (zero-padded)
    bs_ref: (5, 1, 128)     f32    all biases (zero-padded)
    o_ref:  (tb, 128)       bf16   lane-dense logits (cols 2.. are zero)
    """
    # Layer 1: (tb,16) x (16,128) on the MXU, f32 accumulate, f32 bias+ReLU.
    h = jnp.dot(x_ref[...], w1_ref[...], preferred_element_type=jnp.float32)
    h = jnp.maximum(h + bs_ref[0], 0.0)

    # Layers 2-4: (tb,128) x (128,128) with ReLU.
    for k in range(3):
        h = jnp.dot(h.astype(jnp.bfloat16), ws_ref[k],
                    preferred_element_type=jnp.float32)
        h = jnp.maximum(h + bs_ref[k + 1], 0.0)

    # Output layer: no ReLU; store lane-dense bf16.
    y = jnp.dot(h.astype(jnp.bfloat16), ws_ref[3],
                preferred_element_type=jnp.float32) + bs_ref[4]
    o_ref[...] = y.astype(jnp.bfloat16)


def prepare_params(params):
    """Pad / cast / stack the weights ONCE (outside the per-call path)."""
    w1p = _pad2(params["w1"], FEAT_PAD, LANE).astype(jnp.bfloat16)
    wsp = jnp.stack([_pad2(params[f"w{n}"], LANE, LANE).astype(jnp.bfloat16)
                     for n in ("2", "3", "4", "o")])
    bsp = jnp.stack([_pad2(params[f"b{n}"], 1, LANE).astype(jnp.float32)
                     for n in ("1", "2", "3", "4", "o")])
    return {"w1": w1p, "ws": wsp, "bs": bsp}


@functools.partial(jax.jit, static_argnames=("tb",))
def mlp_forward(x, prepared, *, tb=None):
    """x: (B, FEATURES) f32.  prepared: output of prepare_params.

    Returns (B, OUTPUT) f32 logits.
    """
    B = x.shape[0]
    if tb is None:
        tb = _choose_tb(B)
    tb = _round_up(tb, 16)              # bf16 min tile is (16, 128)
    b_pad = _round_up(B, tb)
    grid = b_pad // tb

    # (b_pad, 16) bf16: padded rows/cols are zero (zero weight rows, ReLU(0)=0
    # keep them inert; padded batch rows are sliced off below).
    xp = jnp.pad(x.astype(jnp.bfloat16),
                 ((0, b_pad - B), (0, FEAT_PAD - FEATURES)))

    y_pad = pl.pallas_call(
        _mlp_kernel,
        grid=(grid,),
        in_specs=[
            pl.BlockSpec((tb, FEAT_PAD), lambda i: (i, 0)),
            pl.BlockSpec((FEAT_PAD, LANE), lambda i: (0, 0)),
            pl.BlockSpec((4, LANE, LANE), lambda i: (0, 0, 0)),
            pl.BlockSpec((5, 1, LANE), lambda i: (0, 0, 0)),
        ],
        out_specs=pl.BlockSpec((tb, LANE), lambda i: (i, 0)),
        out_shape=jax.ShapeDtypeStruct((b_pad, LANE), jnp.bfloat16),
        compiler_params=pltpu.CompilerParams(
            dimension_semantics=("parallel",)),   # shard batch axis on v7x
    )(xp, prepared["w1"], prepared["ws"], prepared["bs"])

    return y_pad[:B, :OUTPUT].astype(jnp.float32)


def init_params(key):
    """Deterministic init mirroring nn.Linear: U(-1/sqrt(fan_in), 1/sqrt(fan_in))."""
    dims = [(FEATURES, H1), (H1, H2), (H2, H3), (H3, H4), (H4, OUTPUT)]
    names = ["1", "2", "3", "4", "o"]
    params = {}
    for (fan_in, fan_out), name in zip(dims, names):
        key, kw, kb = jax.random.split(key, 3)
        bound = 1.0 / jnp.sqrt(fan_in)
        params[f"w{name}"] = jax.random.uniform(
            kw, (fan_in, fan_out), jnp.float32, -bound, bound)
        params[f"b{name}"] = jax.random.uniform(
            kb, (1, fan_out), jnp.float32, -bound, bound)
    return params


def mlp_reference(x, p):
    """Same math as the kernel: bf16 dot operands, f32 accumulate / bias / ReLU,
    bf16 final store."""
    def lin(h, w, b):
        return jnp.dot(h.astype(jnp.bfloat16), w.astype(jnp.bfloat16),
                       preferred_element_type=jnp.float32) + b
    h = jnp.maximum(lin(x, p["w1"], p["b1"]), 0.0)
    h = jnp.maximum(lin(h, p["w2"], p["b2"]), 0.0)
    h = jnp.maximum(lin(h, p["w3"], p["b3"]), 0.0)
    h = jnp.maximum(lin(h, p["w4"], p["b4"]), 0.0)
    y = lin(h, p["wo"], p["bo"])
    return y.astype(jnp.bfloat16).astype(jnp.float32)


if __name__ == "__main__":
    key = jax.random.PRNGKey(0)
    key, kx = jax.random.split(key)

    B = 64  # small batch of heart-failure records, 12 clinical features each
    x = jax.random.normal(kx, (B, FEATURES), jnp.float32)
    params = init_params(key)
    prepared = prepare_params(params)   # pad/cast/stack once, reused per call

    out = mlp_forward(x, prepared)      # tb auto -> single 64-row grid step
    jax.block_until_ready(out)

    ref = mlp_reference(x, params)
    assert out.shape == (B, OUTPUT), out.shape
    assert jnp.allclose(out, ref, atol=5e-2, rtol=5e-2), "mismatch vs reference"

    print("KERNEL_OK")
</pallas_src>

<mosaic_0001>
module attributes {stable_mosaic.version = 11 : i64} {
  func.func @_mlp_kernel(%arg0: i32, %arg1: memref<64x16xbf16, #tpu.memory_space<vmem>>, %arg2: memref<16x128xbf16, #tpu.memory_space<vmem>>, %arg3: memref<4x128x128xbf16, #tpu.memory_space<vmem>>, %arg4: memref<5x1x128xf32, #tpu.memory_space<vmem>>, %arg5: memref<64x128xbf16, #tpu.memory_space<vmem>>) attributes {dimension_semantics = [#tpu.dimension_semantics<parallel>], iteration_bounds = array<i64: 1>, scalar_prefetch = 0 : i64, scratch_operands = 0 : i64, tpu.core_type = #tpu.core_type<tc>, window_params = [{transform_indices = @transform_0, window_bounds = array<i64: 64, 16>}, {pipeline_mode = #tpu.pipeline_mode<synchronous>, transform_indices = @transform_1, window_bounds = array<i64: 16, 128>}, {pipeline_mode = #tpu.pipeline_mode<synchronous>, transform_indices = @transform_2, window_bounds = array<i64: 4, 128, 128>}, {pipeline_mode = #tpu.pipeline_mode<synchronous>, transform_indices = @transform_3, window_bounds = array<i64: 5, 1, 128>}, {transform_indices = @transform_4, window_bounds = array<i64: 64, 128>}]} {
    %c0 = arith.constant 0 : index
    %c0_0 = arith.constant 0 : index
    %0 = vector.load %arg1[%c0, %c0_0] : memref<64x16xbf16, #tpu.memory_space<vmem>>, vector<64x16xbf16>
    %c0_1 = arith.constant 0 : index
    %c0_2 = arith.constant 0 : index
    %1 = vector.load %arg2[%c0_1, %c0_2] : memref<16x128xbf16, #tpu.memory_space<vmem>>, vector<16x128xbf16>
    %cst = arith.constant dense<0.000000e+00> : vector<64x128xf32>
    %2 = tpu.matmul %0, %1, %cst {dimension_numbers = #tpu.dot_dimension_numbers<[1], [0], [0], [1], [0, 0, 1, 1], [], []>} : vector<64x16xbf16>, vector<16x128xbf16>, vector<64x128xf32> -> vector<64x128xf32>
    %c0_3 = arith.constant 0 : index
    %c0_4 = arith.constant 0 : index
    %c0_5 = arith.constant 0 : index
    %3 = vector.load %arg4[%c0_3, %c0_4, %c0_5] : memref<5x1x128xf32, #tpu.memory_space<vmem>>, vector<1x1x128xf32>
    %4 = vector.shape_cast %3 : vector<1x1x128xf32> to vector<1x128xf32>
    %5 = vector.broadcast %4 : vector<1x128xf32> to vector<64x128xf32>
    %6 = arith.addf %2, %5 : vector<64x128xf32>
    %cst_6 = arith.constant 0.000000e+00 : f32
    %7 = vector.broadcast %cst_6 : f32 to vector<64x128xf32>
    %8 = arith.maximumf %6, %7 : vector<64x128xf32>
    %9 = arith.truncf %8 : vector<64x128xf32> to vector<64x128xbf16>
    %c0_7 = arith.constant 0 : index
    %c0_8 = arith.constant 0 : index
    %c0_9 = arith.constant 0 : index
    %10 = vector.load %arg3[%c0_7, %c0_8, %c0_9] : memref<4x128x128xbf16, #tpu.memory_space<vmem>>, vector<1x128x128xbf16>
    %11 = vector.shape_cast %10 : vector<1x128x128xbf16> to vector<128x128xbf16>
    %cst_10 = arith.constant dense<0.000000e+00> : vector<64x128xf32>
    %12 = tpu.matmul %9, %11, %cst_10 {dimension_numbers = #tpu.dot_dimension_numbers<[1], [0], [0], [1], [0, 0, 1, 1], [], []>} : vector<64x128xbf16>, vector<128x128xbf16>, vector<64x128xf32> -> vector<64x128xf32>
    %c1 = arith.constant 1 : index
    %c0_11 = arith.constant 0 : index
    %c0_12 = arith.constant 0 : index
    %13 = vector.load %arg4[%c1, %c0_11, %c0_12] : memref<5x1x128xf32, #tpu.memory_space<vmem>>, vector<1x1x128xf32>
    %14 = vector.shape_cast %13 : vector<1x1x128xf32> to vector<1x128xf32>
    %15 = vector.broadcast %14 : vector<1x128xf32> to vector<64x128xf32>
    %16 = arith.addf %12, %15 : vector<64x128xf32>
    %cst_13 = arith.constant 0.000000e+00 : f32
    %17 = vector.broadcast %cst_13 : f32 to vector<64x128xf32>
    %18 = arith.maximumf %16, %17 : vector<64x128xf32>
    %19 = arith.truncf %18 : vector<64x128xf32> to vector<64x128xbf16>
    %c1_14 = arith.constant 1 : index
    %c0_15 = arith.constant 0 : index
    %c0_16 = arith.constant 0 : index
    %20 = vector.load %arg3[%c1_14, %c0_15, %c0_16] : memref<4x128x128xbf16, #tpu.memory_space<vmem>>, vector<1x128x128xbf16>
    %21 = vector.shape_cast %20 : vector<1x128x128xbf16> to vector<128x128xbf16>
    %cst_17 = arith.constant dense<0.000000e+00> : vector<64x128xf32>
    %22 = tpu.matmul %19, %21, %cst_17 {dimension_numbers = #tpu.dot_dimension_numbers<[1], [0], [0], [1], [0, 0, 1, 1], [], []>} : vector<64x128xbf16>, vector<128x128xbf16>, vector<64x128xf32> -> vector<64x128xf32>
    %c2 = arith.constant 2 : index
    %c0_18 = arith.constant 0 : index
    %c0_19 = arith.constant 0 : index
    %23 = vector.load %arg4[%c2, %c0_18, %c0_19] : memref<5x1x128xf32, #tpu.memory_space<vmem>>, vector<1x1x128xf32>
    %24 = vector.shape_cast %23 : vector<1x1x128xf32> to vector<1x128xf32>
    %25 = vector.broadcast %24 : vector<1x128xf32> to vector<64x128xf32>
    %26 = arith.addf %22, %25 : vector<64x128xf32>
    %cst_20 = arith.constant 0.000000e+00 : f32
    %27 = vector.broadcast %cst_20 : f32 to vector<64x128xf32>
    %28 = arith.maximumf %26, %27 : vector<64x128xf32>
    %29 = arith.truncf %28 : vector<64x128xf32> to vector<64x128xbf16>
    %c2_21 = arith.constant 2 : index
    %c0_22 = arith.constant 0 : index
    %c0_23 = arith.constant 0 : index
    %30 = vector.load %arg3[%c2_21, %c0_22, %c0_23] : memref<4x128x128xbf16, #tpu.memory_space<vmem>>, vector<1x128x128xbf16>
    %31 = vector.shape_cast %30 : vector<1x128x128xbf16> to vector<128x128xbf16>
    %cst_24 = arith.constant dense<0.000000e+00> : vector<64x128xf32>
    %32 = tpu.matmul %29, %31, %cst_24 {dimension_numbers = #tpu.dot_dimension_numbers<[1], [0], [0], [1], [0, 0, 1, 1], [], []>} : vector<64x128xbf16>, vector<128x128xbf16>, vector<64x128xf32> -> vector<64x128xf32>
    %c3 = arith.constant 3 : index
    %c0_25 = arith.constant 0 : index
    %c0_26 = arith.constant 0 : index
    %33 = vector.load %arg4[%c3, %c0_25, %c0_26] : memref<5x1x128xf32, #tpu.memory_space<vmem>>, vector<1x1x128xf32>
    %34 = vector.shape_cast %33 : vector<1x1x128xf32> to vector<1x128xf32>
    %35 = vector.broadcast %34 : vector<1x128xf32> to vector<64x128xf32>
    %36 = arith.addf %32, %35 : vector<64x128xf32>
    %cst_27 = arith.constant 0.000000e+00 : f32
    %37 = vector.broadcast %cst_27 : f32 to vector<64x128xf32>
    %38 = arith.maximumf %36, %37 : vector<64x128xf32>
    %39 = arith.truncf %38 : vector<64x128xf32> to vector<64x128xbf16>
    %c3_28 = arith.constant 3 : index
    %c0_29 = arith.constant 0 : index
    %c0_30 = arith.constant 0 : index
    %40 = vector.load %arg3[%c3_28, %c0_29, %c0_30] : memref<4x128x128xbf16, #tpu.memory_space<vmem>>, vector<1x128x128xbf16>
    %41 = vector.shape_cast %40 : vector<1x128x128xbf16> to vector<128x128xbf16>
    %cst_31 = arith.constant dense<0.000000e+00> : vector<64x128xf32>
    %42 = tpu.matmul %39, %41, %cst_31 {dimension_numbers = #tpu.dot_dimension_numbers<[1], [0], [0], [1], [0, 0, 1, 1], [], []>} : vector<64x128xbf16>, vector<128x128xbf16>, vector<64x128xf32> -> vector<64x128xf32>
    %c4 = arith.constant 4 : index
    %c0_32 = arith.constant 0 : index
    %c0_33 = arith.constant 0 : index
    %43 = vector.load %arg4[%c4, %c0_32, %c0_33] : memref<5x1x128xf32, #tpu.memory_space<vmem>>, vector<1x1x128xf32>
    %44 = vector.shape_cast %43 : vector<1x1x128xf32> to vector<1x128xf32>
    %45 = vector.broadcast %44 : vector<1x128xf32> to vector<64x128xf32>
    %46 = arith.addf %42, %45 : vector<64x128xf32>
    %47 = arith.truncf %46 : vector<64x128xf32> to vector<64x128xbf16>
    %c0_34 = arith.constant 0 : index
    %c0_35 = arith.constant 0 : index
    %48 = vector.load %arg5[%c0_34, %c0_35] : memref<64x128xbf16, #tpu.memory_space<vmem>>, vector<64x128xbf16>
    tpu.vector_store %arg5[%c0_34, %c0_35], %47 {strides = array<i32>} : memref<64x128xbf16, #tpu.memory_space<vmem>>, vector<64x128xbf16>,
    return
  }
  func.func @transform_0(%arg0: i32) -> (i32, i32) {
    %c0_i32 = arith.constant 0 : i32
    %c0_i32_0 = arith.constant 0 : i32
    return %arg0, %c0_i32 : i32, i32
  }
  func.func @transform_1(%arg0: i32) -> (i32, i32) {
    %c0_i32 = arith.constant 0 : i32
    %c0_i32_0 = arith.constant 0 : i32
    %c0_i32_1 = arith.constant 0 : i32
    return %c0_i32, %c0_i32_0 : i32, i32
  }
  func.func @transform_2(%arg0: i32) -> (i32, i32, i32) {
    %c0_i32 = arith.constant 0 : i32
    %c0_i32_0 = arith.constant 0 : i32
    %c0_i32_1 = arith.constant 0 : i32
    %c0_i32_2 = arith.constant 0 : i32
    return %c0_i32, %c0_i32_0, %c0_i32_1 : i32, i32, i32
  }
  func.func @transform_3(%arg0: i32) -> (i32, i32, i32) {
    %c0_i32 = arith.constant 0 : i32
    %c0_i32_0 = arith.constant 0 : i32
    %c0_i32_1 = arith.constant 0 : i32
    %c0_i32_2 = arith.constant 0 : i32
    return %c0_i32, %c0_i32_0, %c0_i32_1 : i32, i32, i32
  }
  func.func @transform_4(%arg0: i32) -> (i32, i32) {
    %c0_i32 = arith.constant 0 : i32
    %c0_i32_0 = arith.constant 0 : i32
    return %arg0, %c0_i32 : i32, i32
  }
}

</mosaic_0001>

<llo_original>
// kernel: mlp_forward.1
$region0: #{mlp_forward.1}
  #allocation0 [shape = 'u32[]', space=smem, size = 0x4, offset = 0x4, fixed_abs, tag = 'smem constant byte address 0x4 - core index']
  #allocation1 [shape = 'u32[144,128]{1,0:T(1,128)}', space=vmem, size = 0x12000, scoped, tag = 'internal scratch']
  %s0 = inlined_call_operand.vmem [shape: bf16[64,16], index: 0, kind: input, shape index: {}]
  %s1 = inlined_call_operand.vmem [shape: bf16[16,128], index: 1, kind: input, shape index: {}]
  %s2 = inlined_call_operand.hbm [shape: bf16[4,128,128], index: 2, kind: input, shape index: {}]
  %s3 = inlined_call_operand.vmem [shape: f32[5,1,128], index: 3, kind: input, shape index: {}]
  %s4 = inlined_call_operand.vmem [shape: bf16[64,128], index: 4, kind: output, shape index: {}]
  %s5 = sld [smem:[#allocation0]]
  $region30: #{mlp_forward.1} parent=0
    _
  %s7 = ssub.s32 1, %s5
  %s8 = scalar_select 0, %s7, %s5
  $region1: #{mlp_forward.1} parent=0
    #allocation2 [shape = 'u8[131072]{0}', space=vmem, size = 0x20000, scoped, tag = 'input window, operand 2, single buffered']
    #allocation3 [shape = 's32[1]{0}', space=sflag, size = 0x4, scoped, tag = 'scoped memory for mlp_forward.1']
    %9 = vsyncpa [#allocation3], 0
    // Predicated region
    $region2: #{mlp_forward.1} parent=1 // pred_check
      _
    $region3: #{mlp_forward.1} parent=1 // pred_check_branch
      %11 = sbr.rel (0) target = $region5
    $region4: #{mlp_forward.1} parent=1 // pred_region
      _
    $region5: #{mlp_forward.1} parent=1 // pred_fallthru
      _
    // Predicated region
    $region6: #{mlp_forward.1} parent=1 // pred_check
      _
    $region7: #{mlp_forward.1} parent=1 // pred_check_branch
      %13 = sbr.rel (0) target = $region9
    $region8: #{mlp_forward.1} parent=1 // pred_region
      _
    $region9: #{mlp_forward.1} parent=1 // pred_fallthru
      _
    // Predicated region
    $region10: #{mlp_forward.1} parent=1 // pred_check
      _
    $region11: #{mlp_forward.1} parent=1 // pred_check_branch
      %15 = sbr.rel (0) target = $region13
    $region12: #{mlp_forward.1} parent=1 // pred_region
      %s17 = ssub.s32 4096, 4096
      %18 = vsyncadd [#allocation3], %s17
      %s19 = sshll.u32 [#allocation2], 4
      %s20 = int_to_ptr.vmem [resolvable:$true] %s19
      %25 = dma.hbm_to_vmem [thread:$0]  %s2, 4096, %s20, [#allocation3], 64, 64, 4
    $region13: #{mlp_forward.1} parent=1 // pred_fallthru
      _
    // Predicated region
    $region14: #{mlp_forward.1} parent=1 // pred_check
      _
    $region15: #{mlp_forward.1} parent=1 // pred_check_branch
      %27 = sbr.rel (0) target = $region17
    $region16: #{mlp_forward.1} parent=1 // pred_region
      _
    $region17: #{mlp_forward.1} parent=1 // pred_fallthru
      _
    // Predicated region
    $region18: #{mlp_forward.1} parent=1 // pred_check
      _
    $region19: #{mlp_forward.1} parent=1 // pred_check_branch
      %29 = sbr.rel (0) target = $region21
    $region20: #{mlp_forward.1} parent=1 // pred_region
      %30 = dma.done [#allocation3], 4096
    $region21: #{mlp_forward.1} parent=1 // pred_fallthru
      _
    %v32 = vld [vmem:[%s0] sm:$0xf]
    %v33 = vld [vmem:[%s0 + $0x4] sm:$0xf]
    %v34 = vld [vmem:[%s0 + $0x8] sm:$0xf]
    %v35 = vld [vmem:[%s0 + $0xc] sm:$0xf]
    %v36 = vld [vmem:[%s0 + $0x10] sm:$0xf]
    %v37 = vld [vmem:[%s0 + $0x14] sm:$0xf]
    %v38 = vld [vmem:[%s0 + $0x18] sm:$0xf]
    %v39 = vld [vmem:[%s0 + $0x1c] sm:$0xf]
    %v40 = vld [vmem:[%s1] sm:$0xf]
    %v41 = vld [vmem:[%s1 + $0x4] sm:$0xf]
    %v42 = vld [vmem:[%s3] sm:$0x1]
    %v44 = vlaneseq
    %v45 = vshrl.u32 %v44, 7
    %v46 = vsub.s32 0, %v45
    %v47 = vrot.slane %v42, %v46
    %v57 = vunpack.c.l.b16 %v32
    %v58 = vunpack.c.l.b16 %v33
    %v59 = vunpack.c.l.b16 %v34
    %v60 = vunpack.c.l.b16 %v35
    %v61 = vunpack.c.l.b16 %v36
    %v62 = vunpack.c.l.b16 %v37
    %v63 = vunpack.c.l.b16 %v38
    %v64 = vunpack.c.l.b16 %v39
    %v65 = vpack.c.b16 %v58, %v57
    %v66 = vpack.c.b16 %v60, %v59
    %v67 = vpack.c.b16 %v62, %v61
    %v68 = vpack.c.b16 %v64, %v63
    %v71 = vunpack.c.l.b16 %v40
    %v72 = vunpack.c.l.b16 %v41
    %v73 = vpack.c.b16 %v72, %v71
    %vm75 = vcmask 130048
    %v77 = vsel %vm75, %v65, 0
    %v80 = vsel %vm75, %v66, 0
    %v83 = vsel %vm75, %v67, 0
    %v86 = vsel %vm75, %v68, 0
    %88 = vmatprep.subr.bf16.mxu0 0
    %89 = vmatpush1.bf16.msra.mxu0 %v73
    %90 = vmatprep.subr.bf16.mxu0 0
    %91 = vmatpush1.bf16.msra.mxu0 0
    %92 = vmatprep.subr.bf16.mxu0 0
    %93 = vmatpush1.bf16.msra.mxu0 0
    %94 = vmatprep.subr.bf16.mxu0 0
    %95 = vmatpush1.bf16.msra.mxu0 0
    %96 = vmatprep.subr.bf16.mxu0 0
    %97 = vmatpush1.bf16.msra.mxu0 0
    %98 = vmatprep.subr.bf16.mxu0 0
    %99 = vmatpush1.bf16.msra.mxu0 0
    %100 = vmatprep.subr.bf16.mxu0 0
    %101 = vmatpush1.bf16.msra.mxu0 0
    %102 = vmatprep.subr.bf16.mxu0 0
    %103 = vmatpush1.bf16.msra.mxu0 0
    %104 = vmatprep.subr.bf16.mxu0 0
    %105 = vmatpush1.bf16.msra.mxu0 0
    %106 = vmatprep.subr.bf16.mxu0 0
    %107 = vmatpush1.bf16.msra.mxu0 0
    %108 = vmatprep.subr.bf16.mxu0 0
    %109 = vmatpush1.bf16.msra.mxu0 0
    %110 = vmatprep.subr.bf16.mxu0 0
    %111 = vmatpush1.bf16.msra.mxu0 0
    %112 = vmatprep.subr.bf16.mxu0 0
    %113 = vmatpush1.bf16.msra.mxu0 0
    %114 = vmatprep.subr.bf16.mxu0 0
    %115 = vmatpush1.bf16.msra.mxu0 0
    %116 = vmatprep.subr.bf16.mxu0 0
    %117 = vmatpush1.bf16.msra.mxu0 0
    %118 = vmatprep.subr.bf16.mxu0 0
    %119 = vmatpush1.bf16.msra.mxu0 0
    %120 = vmatprep.mubr.bf16.mxu0 0
    %121 = vmatmul.mubr.bf16.gmra.mrb[0].mxu0 %v77
    %v122 = vpop.f32.mrb[0].mxu0
    %v123 = vadd.f32 %v47, %v122
    %v124 = vpop.f32.mrb[0].mxu0
    %v125 = vpop.f32.mrb[0].mxu0
    %v126 = vadd.f32 %v47, %v125
    %v127 = vpop.f32.mrb[0].mxu0
    %128 = vmatprep.mubr.bf16.mxu0 0
    %129 = vmatmul.mubr.bf16.gmra.mrb[0].mxu0 %v80
    %v130 = vpop.f32.mrb[0].mxu0
    %v131 = vadd.f32 %v47, %v130
    %v132 = vpop.f32.mrb[0].mxu0
    %v133 = vpop.f32.mrb[0].mxu0
    %v134 = vadd.f32 %v47, %v133
    %v135 = vpop.f32.mrb[0].mxu0
    %136 = vmatprep.mubr.bf16.mxu0 0
    %137 = vmatmul.mubr.bf16.gmra.mrb[0].mxu0 %v83
    %v138 = vpop.f32.mrb[0].mxu0
    %v139 = vadd.f32 %v47, %v138
    %v140 = vpop.f32.mrb[0].mxu0
    %v141 = vpop.f32.mrb[0].mxu0
    %v142 = vadd.f32 %v47, %v141
    %v143 = vpop.f32.mrb[0].mxu0
    %144 = vmatprep.mubr.bf16.mxu0 0
    %145 = vmatmul.mubr.bf16.gmra.mrb[0].mxu0 %v86
    %v146 = vpop.f32.mrb[0].mxu0
    %v147 = vadd.f32 %v47, %v146
    %v148 = vpop.f32.mrb[0].mxu0
    %v149 = vpop.f32.mrb[0].mxu0
    %v150 = vadd.f32 %v47, %v149
    %v151 = vpop.f32.mrb[0].mxu0
    %152 = vdwg.mxu0
    %v153 = vmax.f32 %v123, 0.0
    %v154 = vmax.f32 %v126, 0.0
    %v155 = vmax.f32 %v131, 0.0
    %v156 = vmax.f32 %v134, 0.0
    %v157 = vmax.f32 %v139, 0.0
    %v158 = vmax.f32 %v142, 0.0
    %v159 = vmax.f32 %v147, 0.0
    %v160 = vmax.f32 %v150, 0.0
    %v161 = vpack.c.bf16 %v154, %v153
    %v162 = vpack.c.bf16 %v156, %v155
    %v163 = vpack.c.bf16 %v158, %v157
    %v164 = vpack.c.bf16 %v160, %v159
    %v165 = vld [vmem:[#allocation2] sm:$0xf]
    %v166 = vld [vmem:[#allocation2 + $0x4] sm:$0xf]
    %v167 = vld [vmem:[#allocation2 + $0x8] sm:$0xf]
    %v168 = vld [vmem:[#allocation2 + $0xc] sm:$0xf]
    %v169 = vld [vmem:[#allocation2 + $0x10] sm:$0xf]
    %v170 = vld [vmem:[#allocation2 + $0x14] sm:$0xf]
    %v171 = vld [vmem:[#allocation2 + $0x18] sm:$0xf]
    %v172 = vld [vmem:[#allocation2 + $0x1c] sm:$0xf]
    %v173 = vld [vmem:[#allocation2 + $0x20] sm:$0xf]
    %v174 = vld [vmem:[#allocation2 + $0x24] sm:$0xf]
    %v175 = vld [vmem:[#allocation2 + $0x28] sm:$0xf]
    %v176 = vld [vmem:[#allocation2 + $0x2c] sm:$0xf]
    %v177 = vld [vmem:[#allocation2 + $0x30] sm:$0xf]
    %v178 = vld [vmem:[#allocation2 + $0x34] sm:$0xf]
    %v179 = vld [vmem:[#allocation2 + $0x38] sm:$0xf]
    %v180 = vld [vmem:[#allocation2 + $0x3c] sm:$0xf]
    %s181 = scalar_lea.vmem %s3, 1
    %v182 = vld [vmem:[%s181] sm:$0x1]
    %v184 = vlaneseq
    %v185 = vshrl.u32 %v184, 7
    %v186 = vsub.s32 0, %v185
    %v187 = vrot.slane %v182, %v186
    %v205 = vunpack.c.l.b16 %v165
    %v206 = vunpack.c.l.b16 %v166
    %v207 = vunpack.c.l.b16 %v167
    %v208 = vunpack.c.l.b16 %v168
    %v209 = vunpack.c.l.b16 %v169
    %v210 = vunpack.c.l.b16 %v170
    %v211 = vunpack.c.l.b16 %v171
    %v212 = vunpack.c.l.b16 %v172
    %v213 = vunpack.c.l.b16 %v173
    %v214 = vunpack.c.l.b16 %v174
    %v215 = vunpack.c.l.b16 %v175
    %v216 = vunpack.c.l.b16 %v176
    %v217 = vunpack.c.l.b16 %v177
    %v218 = vunpack.c.l.b16 %v178
    %v219 = vunpack.c.l.b16 %v179
    %v220 = vunpack.c.l.b16 %v180
    %v221 = vpack.c.b16 %v206, %v205
    %v222 = vpack.c.b16 %v208, %v207
    %v223 = vpack.c.b16 %v210, %v209
    %v224 = vpack.c.b16 %v212, %v211
    %v225 = vpack.c.b16 %v214, %v213
    %v226 = vpack.c.b16 %v216, %v215
    %v227 = vpack.c.b16 %v218, %v217
    %v228 = vpack.c.b16 %v220, %v219
    %237 = vmatprep.subr.bf16.mxu0 0
    %238 = vmatpush1.bf16.msra.mxu0 %v221
    %239 = vmatprep.subr.bf16.mxu0 0
    %240 = vmatpush1.bf16.msra.mxu0 %v222
    %241 = vmatprep.subr.bf16.mxu0 0
    %242 = vmatpush1.bf16.msra.mxu0 %v223
    %243 = vmatprep.subr.bf16.mxu0 0
    %244 = vmatpush1.bf16.msra.mxu0 %v224
    %245 = vmatprep.subr.bf16.mxu0 0
    %246 = vmatpush1.bf16.msra.mxu0 %v225
    %247 = vmatprep.subr.bf16.mxu0 0
    %248 = vmatpush1.bf16.msra.mxu0 %v226
    %249 = vmatprep.subr.bf16.mxu0 0
    %250 = vmatpush1.bf16.msra.mxu0 %v227
    %251 = vmatprep.subr.bf16.mxu0 0
    %252 = vmatpush1.bf16.msra.mxu0 %v228
    %253 = vmatprep.subr.bf16.mxu0 0
    %254 = vmatpush1.bf16.msra.mxu0 0
    %255 = vmatprep.subr.bf16.mxu0 0
    %256 = vmatpush1.bf16.msra.mxu0 0
    %257 = vmatprep.subr.bf16.mxu0 0
    %258 = vmatpush1.bf16.msra.mxu0 0
    %259 = vmatprep.subr.bf16.mxu0 0
    %260 = vmatpush1.bf16.msra.mxu0 0
    %261 = vmatprep.subr.bf16.mxu0 0
    %262 = vmatpush1.bf16.msra.mxu0 0
    %263 = vmatprep.subr.bf16.mxu0 0
    %264 = vmatpush1.bf16.msra.mxu0 0
    %265 = vmatprep.subr.bf16.mxu0 0
    %266 = vmatpush1.bf16.msra.mxu0 0
    %267 = vmatprep.subr.bf16.mxu0 0
    %268 = vmatpush1.bf16.msra.mxu0 0
    %269 = vmatprep.mubr.bf16.mxu0 0
    %270 = vmatmul.mubr.bf16.gmra.mrb[0].mxu0 %v161
    %v271 = vpop.f32.mrb[0].mxu0
    %v272 = vadd.f32 %v187, %v271
    %v273 = vpop.f32.mrb[0].mxu0
    %v274 = vpop.f32.mrb[0].mxu0
    %v275 = vadd.f32 %v187, %v274
    %v276 = vpop.f32.mrb[0].mxu0
    %277 = vmatprep.mubr.bf16.mxu0 0
    %278 = vmatmul.mubr.bf16.gmra.mrb[0].mxu0 %v162
    %v279 = vpop.f32.mrb[0].mxu0
    %v280 = vadd.f32 %v187, %v279
    %v281 = vpop.f32.mrb[0].mxu0
    %v282 = vpop.f32.mrb[0].mxu0
    %v283 = vadd.f32 %v187, %v282
    %v284 = vpop.f32.mrb[0].mxu0
    %285 = vmatprep.mubr.bf16.mxu0 0
    %286 = vmatmul.mubr.bf16.gmra.mrb[0].mxu0 %v163
    %v287 = vpop.f32.mrb[0].mxu0
    %v288 = vadd.f32 %v187, %v287
    %v289 = vpop.f32.mrb[0].mxu0
    %v290 = vpop.f32.mrb[0].mxu0
    %v291 = vadd.f32 %v187, %v290
    %v292 = vpop.f32.mrb[0].mxu0
    %293 = vmatprep.mubr.bf16.mxu0 0
    %294 = vmatmul.mubr.bf16.gmra.mrb[0].mxu0 %v164
    %v295 = vpop.f32.mrb[0].mxu0
    %v296 = vadd.f32 %v187, %v295
    %v297 = vpop.f32.mrb[0].mxu0
    %v298 = vpop.f32.mrb[0].mxu0
    %v299 = vadd.f32 %v187, %v298
    %v300 = vpop.f32.mrb[0].mxu0
    %301 = vdwg.mxu0
    %v302 = vmax.f32 %v272, 0.0
    %v303 = vmax.f32 %v275, 0.0
    %v304 = vmax.f32 %v280, 0.0
    %v305 = vmax.f32 %v283, 0.0
    %v306 = vmax.f32 %v288, 0.0
    %v307 = vmax.f32 %v291, 0.0
    %v308 = vmax.f32 %v296, 0.0
    %v309 = vmax.f32 %v299, 0.0
    %v310 = vpack.c.bf16 %v303, %v302
    %v311 = vpack.c.bf16 %v305, %v304
    %v312 = vpack.c.bf16 %v307, %v306
    %v313 = vpack.c.bf16 %v309, %v308
    %s314 = scalar_lea.vmem [#allocation2], 64
    %v315 = vld [vmem:[%s314] sm:$0xf]
    %v316 = vld [vmem:[%s314 + $0x4] sm:$0xf]
    %v317 = vld [vmem:[%s314 + $0x8] sm:$0xf]
    %v318 = vld [vmem:[%s314 + $0xc] sm:$0xf]
    %v319 = vld [vmem:[%s314 + $0x10] sm:$0xf]
    %v320 = vld [vmem:[%s314 + $0x14] sm:$0xf]
    %v321 = vld [vmem:[%s314 + $0x18] sm:$0xf]
    %v322 = vld [vmem:[%s314 + $0x1c] sm:$0xf]
    %v323 = vld [vmem:[%s314 + $0x20] sm:$0xf]
    %v324 = vld [vmem:[%s314 + $0x24] sm:$0xf]
    %v325 = vld [vmem:[%s314 + $0x28] sm:$0xf]
    %v326 = vld [vmem:[%s314 + $0x2c] sm:$0xf]
    %v327 = vld [vmem:[%s314 + $0x30] sm:$0xf]
    %v328 = vld [vmem:[%s314 + $0x34] sm:$0xf]
    %v329 = vld [vmem:[%s314 + $0x38] sm:$0xf]
    %v330 = vld [vmem:[%s314 + $0x3c] sm:$0xf]
    %s331 = scalar_lea.vmem %s3, 2
    %v332 = vld [vmem:[%s331] sm:$0x1]
    %v334 = vlaneseq
    %v335 = vshrl.u32 %v334, 7
    %v336 = vsub.s32 0, %v335
    %v337 = vrot.slane %v332, %v336
    %v355 = vunpack.c.l.b16 %v315
    %v356 = vunpack.c.l.b16 %v316
    %v357 = vunpack.c.l.b16 %v317
    %v358 = vunpack.c.l.b16 %v318
    %v359 = vunpack.c.l.b16 %v319
    %v360 = vunpack.c.l.b16 %v320
    %v361 = vunpack.c.l.b16 %v321
    %v362 = vunpack.c.l.b16 %v322
    %v363 = vunpack.c.l.b16 %v323
    %v364 = vunpack.c.l.b16 %v324
    %v365 = vunpack.c.l.b16 %v325
    %v366 = vunpack.c.l.b16 %v326
    %v367 = vunpack.c.l.b16 %v327
    %v368 = vunpack.c.l.b16 %v328
    %v369 = vunpack.c.l.b16 %v329
    %v370 = vunpack.c.l.b16 %v330
    %v371 = vpack.c.b16 %v356, %v355
    %v372 = vpack.c.b16 %v358, %v357
    %v373 = vpack.c.b16 %v360, %v359
    %v374 = vpack.c.b16 %v362, %v361
    %v375 = vpack.c.b16 %v364, %v363
    %v376 = vpack.c.b16 %v366, %v365
    %v377 = vpack.c.b16 %v368, %v367
    %v378 = vpack.c.b16 %v370, %v369
    %387 = vmatprep.subr.bf16.mxu0 0
    %388 = vmatpush1.bf16.msra.mxu0 %v371
    %389 = vmatprep.subr.bf16.mxu0 0
    %390 = vmatpush1.bf16.msra.mxu0 %v372
    %391 = vmatprep.subr.bf16.mxu0 0
    %392 = vmatpush1.bf16.msra.mxu0 %v373
    %393 = vmatprep.subr.bf16.mxu0 0
    %394 = vmatpush1.bf16.msra.mxu0 %v374
    %395 = vmatprep.subr.bf16.mxu0 0
    %396 = vmatpush1.bf16.msra.mxu0 %v375
    %397 = vmatprep.subr.bf16.mxu0 0
    %398 = vmatpush1.bf16.msra.mxu0 %v376
    %399 = vmatprep.subr.bf16.mxu0 0
    %400 = vmatpush1.bf16.msra.mxu0 %v377
    %401 = vmatprep.subr.bf16.mxu0 0
    %402 = vmatpush1.bf16.msra.mxu0 %v378
    %403 = vmatprep.subr.bf16.mxu0 0
    %404 = vmatpush1.bf16.msra.mxu0 0
    %405 = vmatprep.subr.bf16.mxu0 0
    %406 = vmatpush1.bf16.msra.mxu0 0
    %407 = vmatprep.subr.bf16.mxu0 0
    %408 = vmatpush1.bf16.msra.mxu0 0
    %409 = vmatprep.subr.bf16.mxu0 0
    %410 = vmatpush1.bf16.msra.mxu0 0
    %411 = vmatprep.subr.bf16.mxu0 0
    %412 = vmatpush1.bf16.msra.mxu0 0
    %413 = vmatprep.subr.bf16.mxu0 0
    %414 = vmatpush1.bf16.msra.mxu0 0
    %415 = vmatprep.subr.bf16.mxu0 0
    %416 = vmatpush1.bf16.msra.mxu0 0
    %417 = vmatprep.subr.bf16.mxu0 0
    %418 = vmatpush1.bf16.msra.mxu0 0
    %419 = vmatprep.mubr.bf16.mxu0 0
    %420 = vmatmul.mubr.bf16.gmra.mrb[0].mxu0 %v310
    %v421 = vpop.f32.mrb[0].mxu0
    %v422 = vadd.f32 %v337, %v421
    %v423 = vpop.f32.mrb[0].mxu0
    %v424 = vpop.f32.mrb[0].mxu0
    %v425 = vadd.f32 %v337, %v424
    %v426 = vpop.f32.mrb[0].mxu0
    %427 = vmatprep.mubr.bf16.mxu0 0
    %428 = vmatmul.mubr.bf16.gmra.mrb[0].mxu0 %v311
    %v429 = vpop.f32.mrb[0].mxu0
    %v430 = vadd.f32 %v337, %v429
    %v431 = vpop.f32.mrb[0].mxu0
    %v432 = vpop.f32.mrb[0].mxu0
    %v433 = vadd.f32 %v337, %v432
    %v434 = vpop.f32.mrb[0].mxu0
    %435 = vmatprep.mubr.bf16.mxu0 0
    %436 = vmatmul.mubr.bf16.gmra.mrb[0].mxu0 %v312
    %v437 = vpop.f32.mrb[0].mxu0
    %v438 = vadd.f32 %v337, %v437
    %v439 = vpop.f32.mrb[0].mxu0
    %v440 = vpop.f32.mrb[0].mxu0
    %v441 = vadd.f32 %v337, %v440
    %v442 = vpop.f32.mrb[0].mxu0
    %443 = vmatprep.mubr.bf16.mxu0 0
    %444 = vmatmul.mubr.bf16.gmra.mrb[0].mxu0 %v313
    %v445 = vpop.f32.mrb[0].mxu0
    %v446 = vadd.f32 %v337, %v445
    %v447 = vpop.f32.mrb[0].mxu0
    %v448 = vpop.f32.mrb[0].mxu0
    %v449 = vadd.f32 %v337, %v448
    %v450 = vpop.f32.mrb[0].mxu0
    %451 = vdwg.mxu0
    %v452 = vmax.f32 %v422, 0.0
    %v453 = vmax.f32 %v425, 0.0
    %v454 = vmax.f32 %v430, 0.0
    %v455 = vmax.f32 %v433, 0.0
    %v456 = vmax.f32 %v438, 0.0
    %v457 = vmax.f32 %v441, 0.0
    %v458 = vmax.f32 %v446, 0.0
    %v459 = vmax.f32 %v449, 0.0
    %v460 = vpack.c.bf16 %v453, %v452
    %v461 = vpack.c.bf16 %v455, %v454
    %v462 = vpack.c.bf16 %v457, %v456
    %v463 = vpack.c.bf16 %v459, %v458
    %s464 = scalar_lea.vmem [#allocation2], 128
    %v465 = vld [vmem:[%s464] sm:$0xf]
    %v466 = vld [vmem:[%s464 + $0x4] sm:$0xf]
    %v467 = vld [vmem:[%s464 + $0x8] sm:$0xf]
    %v468 = vld [vmem:[%s464 + $0xc] sm:$0xf]
    %v469 = vld [vmem:[%s464 + $0x10] sm:$0xf]
    %v470 = vld [vmem:[%s464 + $0x14] sm:$0xf]
    %v471 = vld [vmem:[%s464 + $0x18] sm:$0xf]
    %v472 = vld [vmem:[%s464 + $0x1c] sm:$0xf]
    %v473 = vld [vmem:[%s464 + $0x20] sm:$0xf]
    %v474 = vld [vmem:[%s464 + $0x24] sm:$0xf]
    %v475 = vld [vmem:[%s464 + $0x28] sm:$0xf]
    %v476 = vld [vmem:[%s464 + $0x2c] sm:$0xf]
    %v477 = vld [vmem:[%s464 + $0x30] sm:$0xf]
    %v478 = vld [vmem:[%s464 + $0x34] sm:$0xf]
    %v479 = vld [vmem:[%s464 + $0x38] sm:$0xf]
    %v480 = vld [vmem:[%s464 + $0x3c] sm:$0xf]
    %s481 = scalar_lea.vmem %s3, 3
    %v482 = vld [vmem:[%s481] sm:$0x1]
    %v484 = vlaneseq
    %v485 = vshrl.u32 %v484, 7
    %v486 = vsub.s32 0, %v485
    %v487 = vrot.slane %v482, %v486
    %v505 = vunpack.c.l.b16 %v465
    %v506 = vunpack.c.l.b16 %v466
    %v507 = vunpack.c.l.b16 %v467
    %v508 = vunpack.c.l.b16 %v468
    %v509 = vunpack.c.l.b16 %v469
    %v510 = vunpack.c.l.b16 %v470
    %v511 = vunpack.c.l.b16 %v471
    %v512 = vunpack.c.l.b16 %v472
    %v513 = vunpack.c.l.b16 %v473
    %v514 = vunpack.c.l.b16 %v474
    %v515 = vunpack.c.l.b16 %v475
    %v516 = vunpack.c.l.b16 %v476
    %v517 = vunpack.c.l.b16 %v477
    %v518 = vunpack.c.l.b16 %v478
    %v519 = vunpack.c.l.b16 %v479
    %v520 = vunpack.c.l.b16 %v480
    %v521 = vpack.c.b16 %v506, %v505
    %v522 = vpack.c.b16 %v508, %v507
    %v523 = vpack.c.b16 %v510, %v509
    %v524 = vpack.c.b16 %v512, %v511
    %v525 = vpack.c.b16 %v514, %v513
    %v526 = vpack.c.b16 %v516, %v515
    %v527 = vpack.c.b16 %v518, %v517
    %v528 = vpack.c.b16 %v520, %v519
    %537 = vmatprep.subr.bf16.mxu0 0
    %538 = vmatpush1.bf16.msra.mxu0 %v521
    %539 = vmatprep.subr.bf16.mxu0 0
    %540 = vmatpush1.bf16.msra.mxu0 %v522
    %541 = vmatprep.subr.bf16.mxu0 0
    %542 = vmatpush1.bf16.msra.mxu0 %v523
    %543 = vmatprep.subr.bf16.mxu0 0
    %544 = vmatpush1.bf16.msra.mxu0 %v524
    %545 = vmatprep.subr.bf16.mxu0 0
    %546 = vmatpush1.bf16.msra.mxu0 %v525
    %547 = vmatprep.subr.bf16.mxu0 0
    %548 = vmatpush1.bf16.msra.mxu0 %v526
    %549 = vmatprep.subr.bf16.mxu0 0
    %550 = vmatpush1.bf16.msra.mxu0 %v527
    %551 = vmatprep.subr.bf16.mxu0 0
    %552 = vmatpush1.bf16.msra.mxu0 %v528
    %553 = vmatprep.subr.bf16.mxu0 0
    %554 = vmatpush1.bf16.msra.mxu0 0
    %555 = vmatprep.subr.bf16.mxu0 0
    %556 = vmatpush1.bf16.msra.mxu0 0
    %557 = vmatprep.subr.bf16.mxu0 0
    %558 = vmatpush1.bf16.msra.mxu0 0
    %559 = vmatprep.subr.bf16.mxu0 0
    %560 = vmatpush1.bf16.msra.mxu0 0
    %561 = vmatprep.subr.bf16.mxu0 0
    %562 = vmatpush1.bf16.msra.mxu0 0
    %563 = vmatprep.subr.bf16.mxu0 0
    %564 = vmatpush1.bf16.msra.mxu0 0
    %565 = vmatprep.subr.bf16.mxu0 0
    %566 = vmatpush1.bf16.msra.mxu0 0
    %567 = vmatprep.subr.bf16.mxu0 0
    %568 = vmatpush1.bf16.msra.mxu0 0
    %569 = vmatprep.mubr.bf16.mxu0 0
    %570 = vmatmul.mubr.bf16.gmra.mrb[0].mxu0 %v460
    %v571 = vpop.f32.mrb[0].mxu0
    %v572 = vadd.f32 %v487, %v571
    %v573 = vpop.f32.mrb[0].mxu0
    %v574 = vpop.f32.mrb[0].mxu0
    %v575 = vadd.f32 %v487, %v574
    %v576 = vpop.f32.mrb[0].mxu0
    %577 = vmatprep.mubr.bf16.mxu0 0
    %578 = vmatmul.mubr.bf16.gmra.mrb[0].mxu0 %v461
    %v579 = vpop.f32.mrb[0].mxu0
    %v580 = vadd.f32 %v487, %v579
    %v581 = vpop.f32.mrb[0].mxu0
    %v582 = vpop.f32.mrb[0].mxu0
    %v583 = vadd.f32 %v487, %v582
    %v584 = vpop.f32.mrb[0].mxu0
    %585 = vmatprep.mubr.bf16.mxu0 0
    %586 = vmatmul.mubr.bf16.gmra.mrb[0].mxu0 %v462
    %v587 = vpop.f32.mrb[0].mxu0
    %v588 = vadd.f32 %v487, %v587
    %v589 = vpop.f32.mrb[0].mxu0
    %v590 = vpop.f32.mrb[0].mxu0
    %v591 = vadd.f32 %v487, %v590
    %v592 = vpop.f32.mrb[0].mxu0
    %593 = vmatprep.mubr.bf16.mxu0 0
    %594 = vmatmul.mubr.bf16.gmra.mrb[0].mxu0 %v463
    %v595 = vpop.f32.mrb[0].mxu0
    %v596 = vadd.f32 %v487, %v595
    %v597 = vpop.f32.mrb[0].mxu0
    %v598 = vpop.f32.mrb[0].mxu0
    %v599 = vadd.f32 %v487, %v598
    %v600 = vpop.f32.mrb[0].mxu0
    %601 = vdwg.mxu0
    %v602 = vmax.f32 %v572, 0.0
    %v603 = vmax.f32 %v575, 0.0
    %v604 = vmax.f32 %v580, 0.0
    %v605 = vmax.f32 %v583, 0.0
    %v606 = vmax.f32 %v588, 0.0
    %v607 = vmax.f32 %v591, 0.0
    %v608 = vmax.f32 %v596, 0.0
    %v609 = vmax.f32 %v599, 0.0
    %v610 = vpack.c.bf16 %v603, %v602
    %v611 = vpack.c.bf16 %v605, %v604
    %v612 = vpack.c.bf16 %v607, %v606
    %v613 = vpack.c.bf16 %v609, %v608
    %s614 = scalar_lea.vmem [#allocation2], 192
    %v615 = vld [vmem:[%s614] sm:$0xf]
    %v616 = vld [vmem:[%s614 + $0x4] sm:$0xf]
    %v617 = vld [vmem:[%s614 + $0x8] sm:$0xf]
    %v618 = vld [vmem:[%s614 + $0xc] sm:$0xf]
    %v619 = vld [vmem:[%s614 + $0x10] sm:$0xf]
    %v620 = vld [vmem:[%s614 + $0x14] sm:$0xf]
    %v621 = vld [vmem:[%s614 + $0x18] sm:$0xf]
    %v622 = vld [vmem:[%s614 + $0x1c] sm:$0xf]
    %v623 = vld [vmem:[%s614 + $0x20] sm:$0xf]
    %v624 = vld [vmem:[%s614 + $0x24] sm:$0xf]
    %v625 = vld [vmem:[%s614 + $0x28] sm:$0xf]
    %v626 = vld [vmem:[%s614 + $0x2c] sm:$0xf]
    %v627 = vld [vmem:[%s614 + $0x30] sm:$0xf]
    %v628 = vld [vmem:[%s614 + $0x34] sm:$0xf]
    %v629 = vld [vmem:[%s614 + $0x38] sm:$0xf]
    %v630 = vld [vmem:[%s614 + $0x3c] sm:$0xf]
    %s631 = scalar_lea.vmem %s3, 4
    %v632 = vld [vmem:[%s631] sm:$0x1]
    %v634 = vlaneseq
    %v635 = vshrl.u32 %v634, 7
    %v636 = vsub.s32 0, %v635
    %v637 = vrot.slane %v632, %v636
    %v655 = vunpack.c.l.b16 %v615
    %v656 = vunpack.c.l.b16 %v616
    %v657 = vunpack.c.l.b16 %v617
    %v658 = vunpack.c.l.b16 %v618
    %v659 = vunpack.c.l.b16 %v619
    %v660 = vunpack.c.l.b16 %v620
    %v661 = vunpack.c.l.b16 %v621
    %v662 = vunpack.c.l.b16 %v622
    %v663 = vunpack.c.l.b16 %v623
    %v664 = vunpack.c.l.b16 %v624
    %v665 = vunpack.c.l.b16 %v625
    %v666 = vunpack.c.l.b16 %v626
    %v667 = vunpack.c.l.b16 %v627
    %v668 = vunpack.c.l.b16 %v628
    %v669 = vunpack.c.l.b16 %v629
    %v670 = vunpack.c.l.b16 %v630
    %v671 = vpack.c.b16 %v656, %v655
    %v672 = vpack.c.b16 %v658, %v657
    %v673 = vpack.c.b16 %v660, %v659
    %v674 = vpack.c.b16 %v662, %v661
    %v675 = vpack.c.b16 %v664, %v663
    %v676 = vpack.c.b16 %v666, %v665
    %v677 = vpack.c.b16 %v668, %v667
    %v678 = vpack.c.b16 %v670, %v669
    %687 = vmatprep.subr.bf16.mxu0 0
    %688 = vmatpush1.bf16.msra.mxu0 %v671
    %689 = vmatprep.subr.bf16.mxu0 0
    %690 = vmatpush1.bf16.msra.mxu0 %v672
    %691 = vmatprep.subr.bf16.mxu0 0
    %692 = vmatpush1.bf16.msra.mxu0 %v673
    %693 = vmatprep.subr.bf16.mxu0 0
    %694 = vmatpush1.bf16.msra.mxu0 %v674
    %695 = vmatprep.subr.bf16.mxu0 0
    %696 = vmatpush1.bf16.msra.mxu0 %v675
    %697 = vmatprep.subr.bf16.mxu0 0
    %698 = vmatpush1.bf16.msra.mxu0 %v676
    %699 = vmatprep.subr.bf16.mxu0 0
    %700 = vmatpush1.bf16.msra.mxu0 %v677
    %701 = vmatprep.subr.bf16.mxu0 0
    %702 = vmatpush1.bf16.msra.mxu0 %v678
    %703 = vmatprep.subr.bf16.mxu0 0
    %704 = vmatpush1.bf16.msra.mxu0 0
    %705 = vmatprep.subr.bf16.mxu0 0
    %706 = vmatpush1.bf16.msra.mxu0 0
    %707 = vmatprep.subr.bf16.mxu0 0
    %708 = vmatpush1.bf16.msra.mxu0 0
    %709 = vmatprep.subr.bf16.mxu0 0
    %710 = vmatpush1.bf16.msra.mxu0 0
    %711 = vmatprep.subr.bf16.mxu0 0
    %712 = vmatpush1.bf16.msra.mxu0 0
    %713 = vmatprep.subr.bf16.mxu0 0
    %714 = vmatpush1.bf16.msra.mxu0 0
    %715 = vmatprep.subr.bf16.mxu0 0
    %716 = vmatpush1.bf16.msra.mxu0 0
    %717 = vmatprep.subr.bf16.mxu0 0
    %718 = vmatpush1.bf16.msra.mxu0 0
    %719 = vmatprep.mubr.bf16.mxu0 0
    %720 = vmatmul.mubr.bf16.gmra.mrb[0].mxu0 %v610
    %v721 = vpop.f32.mrb[0].mxu0
    %v722 = vadd.f32 %v637, %v721
    %v723 = vpop.f32.mrb[0].mxu0
    %v724 = vpop.f32.mrb[0].mxu0
    %v725 = vadd.f32 %v637, %v724
    %v726 = vpop.f32.mrb[0].mxu0
    %727 = vmatprep.mubr.bf16.mxu0 0
    %728 = vmatmul.mubr.bf16.gmra.mrb[0].mxu0 %v611
    %v729 = vpop.f32.mrb[0].mxu0
    %v730 = vadd.f32 %v637, %v729
    %v731 = vpop.f32.mrb[0].mxu0
    %v732 = vpop.f32.mrb[0].mxu0
    %v733 = vadd.f32 %v637, %v732
    %v734 = vpop.f32.mrb[0].mxu0
    %735 = vmatprep.mubr.bf16.mxu0 0
    %736 = vmatmul.mubr.bf16.gmra.mrb[0].mxu0 %v612
    %v737 = vpop.f32.mrb[0].mxu0
    %v738 = vadd.f32 %v637, %v737
    %v739 = vpop.f32.mrb[0].mxu0
    %v740 = vpop.f32.mrb[0].mxu0
    %v741 = vadd.f32 %v637, %v740
    %v742 = vpop.f32.mrb[0].mxu0
    %743 = vmatprep.mubr.bf16.mxu0 0
    %744 = vmatmul.mubr.bf16.gmra.mrb[0].mxu0 %v613
    %v745 = vpop.f32.mrb[0].mxu0
    %v746 = vadd.f32 %v637, %v745
    %v747 = vpop.f32.mrb[0].mxu0
    %v748 = vpop.f32.mrb[0].mxu0
    %v749 = vadd.f32 %v637, %v748
    %v750 = vpop.f32.mrb[0].mxu0
    %751 = vdwg.mxu0
    %v752 = vpack.c.bf16 %v725, %v722
    %v753 = vpack.c.bf16 %v733, %v730
    %v754 = vpack.c.bf16 %v741, %v738
    %v755 = vpack.c.bf16 %v749, %v746
    %v760 = vunpack.c.l.b16 %v752
    %v761 = vunpack.c.h.b16 %v752
    %v762 = vunpack.c.l.b16 %v753
    %v763 = vunpack.c.h.b16 %v753
    %v764 = vunpack.c.l.b16 %v754
    %v765 = vunpack.c.h.b16 %v754
    %v766 = vunpack.c.l.b16 %v755
    %v767 = vunpack.c.h.b16 %v755
    %v768 = vpack.c.b16 %v760, %v760
    %v769 = vpack.c.b16 %v761, %v761
    %v770 = vpack.c.b16 %v762, %v762
    %v771 = vpack.c.b16 %v763, %v763
    %v772 = vpack.c.b16 %v764, %v764
    %v773 = vpack.c.b16 %v765, %v765
    %v774 = vpack.c.b16 %v766, %v766
    %v775 = vpack.c.b16 %v767, %v767
    %784 = vst [vmem:[%s4] sm:$0xf] %v768
    %785 = vst [vmem:[%s4 + $0x4] sm:$0xf] %v769
    %786 = vst [vmem:[%s4 + $0x8] sm:$0xf] %v770
    %787 = vst [vmem:[%s4 + $0xc] sm:$0xf] %v771
    %788 = vst [vmem:[%s4 + $0x10] sm:$0xf] %v772
    %789 = vst [vmem:[%s4 + $0x14] sm:$0xf] %v773
    %790 = vst [vmem:[%s4 + $0x18] sm:$0xf] %v774
    %791 = vst [vmem:[%s4 + $0x1c] sm:$0xf] %v775
    // Predicated region
    $region22: #{mlp_forward.1} parent=1 // pred_check
      _
    $region23: #{mlp_forward.1} parent=1 // pred_check_branch
      %793 = sbr.rel (0) target = $region25
    $region24: #{mlp_forward.1} parent=1 // pred_region
      _
    $region25: #{mlp_forward.1} parent=1 // pred_fallthru
      _
    // Predicated region
    $region26: #{mlp_forward.1} parent=1 // pred_check
      _
    $region27: #{mlp_forward.1} parent=1 // pred_check_branch
      %795 = sbr.rel (0) target = $region29
    $region28: #{mlp_forward.1} parent=1 // pred_region
      _
    $region29: #{mlp_forward.1} parent=1 // pred_fallthru
      _
    %796 = vsyncpa [#allocation3], 1

</llo_original>
